<compile_context>
chip_gen: v7x
topology: tpu7x:2x2x1
jax: 0.10.0
libtpu: 0.0.40
codegen_flags: <defaults>
</compile_context>

<pallas_src>
import jax
import jax.numpy as jnp
from jax import lax
from jax.experimental import pallas as pl
from jax.experimental.pallas import tpu as pltpu

_LANES = 128
_TILE_BYTES_PER_INPUT = 4 << 20   # ~4 MiB per input per pipeline buffer
_VMEM_LIMIT_BYTES = 32 << 20      # 2 inputs x 2 buffers x 4 MiB + scratch/out
_SMALL_N = 1 << 20                # below this, plain fused XLA wins


def _round_up(x: int, m: int) -> int:
    return ((x + m - 1) // m) * m


def _smape_ref(pred: jax.Array, target: jax.Array) -> jax.Array:
    """Plain-JAX reference / small-n fallback (same math as the PyTorch module)."""
    p = pred.astype(jnp.float32)
    t = target.astype(jnp.float32)
    return jnp.mean(jnp.abs(t - p) / ((jnp.abs(t) + jnp.abs(p)) * 0.5)) * 100.0


def _make_kernel(tile_rows: int, n_valid: int, need_mask: bool):
    def kernel(pred_ref, target_ref, out_ref, acc_ref):
        c = pl.program_id(0)
        i = pl.program_id(1)

        @pl.when(i == 0)
        def _():
            acc_ref[...] = jnp.zeros_like(acc_ref)

        # Cast inside the kernel: bf16/f16 inputs stream half the HBM bytes.
        p = pred_ref[...].astype(jnp.float32)
        t = target_ref[...].astype(jnp.float32)
        # The /2 of the denominator is folded into the final 200/n scale.
        ratio = jnp.abs(t - p) / (jnp.abs(t) + jnp.abs(p))

        def rowsum(x):
            # (tile_rows,128) -> (tile_rows//8, 8, 128) -> sum over leading dim:
            # pure VALU vreg adds, no cross-lane XLU work inside the kernel.
            return jnp.sum(x.reshape(tile_rows // 8, 8, _LANES), axis=0)

        if need_mask:
            # Global (unclamped) tile index and first flat element of the tile.
            g = c * pl.num_programs(1) + i
            tile_start = g * (tile_rows * _LANES)
            tile_elems = tile_rows * _LANES

            @pl.when(tile_start + tile_elems <= n_valid)
            def _():
                acc_ref[...] += rowsum(ratio)

            @pl.when(tile_start + tile_elems > n_valid)
            def _():
                # Mask overhang / padding (n must be < 2**31 for int32 indices).
                row = lax.broadcasted_iota(jnp.int32, (tile_rows, _LANES), 0)
                lane = lax.broadcasted_iota(jnp.int32, (tile_rows, _LANES), 1)
                idx = tile_start + row * _LANES + lane
                acc_ref[...] += rowsum(jnp.where(idx < n_valid, ratio, 0.0))
        else:
            acc_ref[...] += rowsum(ratio)

        @pl.when(i == pl.num_programs(1) - 1)
        def _():
            out_ref[...] = acc_ref[...]

    return kernel


def _smape_pallas(pred: jax.Array, target: jax.Array) -> jax.Array:
    n = pred.size
    itemsize = max(pred.dtype.itemsize, target.dtype.itemsize)
    sub_pack = max(8, 32 // min(pred.dtype.itemsize, target.dtype.itemsize))

    # Lane / sublane sizing.  Common case (n % 128 == 0, >= one sublane group of
    # rows): no padding copy at all — the flat reshape is free.
    lane_len = _round_up(n, _LANES)
    rows = lane_len // _LANES
    if rows < sub_pack:
        rows = sub_pack
        lane_len = rows * _LANES
    padded_len = lane_len

    max_tile_rows = max(
        sub_pack,
        (_TILE_BYTES_PER_INPUT // (_LANES * itemsize)) // sub_pack * sub_pack,
    )
    tile_rows = min(max_tile_rows, (rows // sub_pack) * sub_pack)

    total_tiles = pl.cdiv(rows, tile_rows)
    num_splits = 2 if total_tiles >= 2 else 1          # one per v7x TensorCore
    tiles_per_split = pl.cdiv(total_tiles, num_splits)
    need_mask = num_splits * tiles_per_split * tile_rows * _LANES > n

    def prep(x):
        flat = x.reshape(-1)                            # free for contiguous input
        if padded_len != n:
            # Only hit when n is not lane-aligned (or tiny).  Pad value 1.0 is
            # harmless (|1-1|/(|1|+|1|)=0) and the in-kernel mask ignores it.
            flat = jnp.pad(flat, (0, padded_len - n), constant_values=1)
        return flat.reshape(rows, _LANES)

    # Clamp the block index so no DMA is ever issued fully outside the array;
    # the in-kernel mask (from the UNclamped tile index) zeroes any duplicated
    # or overhanging contribution.
    in_map = lambda c, i: (jnp.minimum(c * tiles_per_split + i, total_tiles - 1), 0)

    partials = pl.pallas_call(
        _make_kernel(tile_rows, n, need_mask),
        out_shape=jax.ShapeDtypeStruct((num_splits * 8, _LANES), jnp.float32),
        grid_spec=pltpu.PrefetchScalarGridSpec(
            num_scalar_prefetch=0,
            grid=(num_splits, tiles_per_split),
            in_specs=[
                pl.BlockSpec((tile_rows, _LANES), in_map),
                pl.BlockSpec((tile_rows, _LANES), in_map),
            ],
            out_specs=pl.BlockSpec((8, _LANES), lambda c, i: (c, 0)),
            scratch_shapes=[pltpu.VMEM((8, _LANES), jnp.float32)],
        ),
        compiler_params=pltpu.CompilerParams(
            dimension_semantics=("parallel", "arbitrary"),
            vmem_limit_bytes=_VMEM_LIMIT_BYTES,
        ),
    )(prep(pred), prep(target))

    # Single cross-lane reduction on a tiny array; mean, *100, and the folded /2
    # applied exactly once with the true (unpadded) element count.
    # Like the PyTorch module, no epsilon: pred == target == 0 still gives NaN.
    return jnp.sum(partials) * (200.0 / float(n))


def smape_loss(pred: jax.Array, target: jax.Array, *,
               min_pallas_elements: int = _SMALL_N) -> jax.Array:
    assert pred.shape == target.shape, "pred/target shapes must match"
    n = pred.size
    if n == 0 or n < min_pallas_elements:
        # Kernel launch / pipeline prologue dominates for tiny inputs.
        return _smape_ref(pred, target)
    return _smape_pallas(pred, target)


if __name__ == "__main__":
    key = jax.random.PRNGKey(0)
    k1, k2, k3, k4 = jax.random.split(key, 4)

    # Small shape consistent with a generic regression target tensor (NCHW).
    shape = (2, 4, 16, 16)
    # Keep values away from zero so the denominator is well-conditioned.
    pred = jax.random.uniform(k1, shape, jnp.float32, 0.5, 2.0)
    target = jax.random.uniform(k2, shape, jnp.float32, 0.5, 2.0)

    # 1) Force the Pallas path (lane-aligned, single tile, no masking).
    loss = smape_loss(pred, target, min_pallas_elements=0)
    jax.block_until_ready(loss)
    ref = _smape_ref(pred, target)
    assert jnp.allclose(loss, ref, rtol=1e-5, atol=1e-5), (loss, ref)

    # 2) Ragged size (not a multiple of 128): exercises the in-kernel mask and
    #    the 2-way "parallel" split.
    shape2 = (3, 5, 7, 11)  # 1155 elements
    p2 = jax.random.uniform(k3, shape2, jnp.float32, 0.5, 2.0)
    t2 = jax.random.uniform(k4, shape2, jnp.float32, 0.5, 2.0)
    loss2 = smape_loss(p2, t2, min_pallas_elements=0)
    ref2 = _smape_ref(p2, t2)
    assert jnp.allclose(loss2, ref2, rtol=1e-5, atol=1e-5), (loss2, ref2)

    # 3) bf16 inputs: native-dtype streaming + 16-row sublane packing.
    loss3 = smape_loss(pred.astype(jnp.bfloat16), target.astype(jnp.bfloat16),
                       min_pallas_elements=0)
    ref3 = _smape_ref(pred.astype(jnp.bfloat16), target.astype(jnp.bfloat16))
    assert jnp.allclose(loss3, ref3, rtol=1e-5, atol=1e-5), (loss3, ref3)

    # 4) Default call (small-n fallback path).
    loss4 = smape_loss(pred, target)
    assert jnp.allclose(loss4, ref, rtol=1e-5, atol=1e-5), (loss4, ref)

    jax.block_until_ready((loss, loss2, loss3, loss4))
    print("KERNEL_OK")
</pallas_src>

<mosaic_0001>
module attributes {stable_mosaic.version = 11 : i64} {
  func.func @kernel(%arg0: i32, %arg1: i32, %arg2: memref<16x128xf32, #tpu.memory_space<vmem>>, %arg3: memref<16x128xf32, #tpu.memory_space<vmem>>, %arg4: memref<8x128xf32, #tpu.memory_space<vmem>>, %arg5: memref<8x128xf32, #tpu.memory_space<vmem>>) attributes {dimension_semantics = [#tpu.dimension_semantics<parallel>, #tpu.dimension_semantics<arbitrary>], iteration_bounds = array<i64: 1, 1>, scalar_prefetch = 0 : i64, scratch_operands = 1 : i64, tpu.core_type = #tpu.core_type<tc>, window_params = [{transform_indices = @transform_0, window_bounds = array<i64: 16, 128>}, {transform_indices = @transform_1, window_bounds = array<i64: 16, 128>}, {transform_indices = @transform_2, window_bounds = array<i64: 8, 128>}]} {
    %c0_i32 = arith.constant 0 : i32
    %0 = arith.cmpi eq, %arg1, %c0_i32 : i32
    %1 = arith.extui %0 : i1 to i32
    %c0_i32_0 = arith.constant 0 : i32
    %2 = arith.cmpi ne, %1, %c0_i32_0 : i32
    scf.if %2 {
      %cst_10 = arith.constant 0.000000e+00 : f32
      %19 = vector.broadcast %cst_10 : f32 to vector<8x128xf32>
      %c0_11 = arith.constant 0 : index
      %c0_12 = arith.constant 0 : index
      %20 = vector.load %arg5[%c0_11, %c0_12] : memref<8x128xf32, #tpu.memory_space<vmem>>, vector<8x128xf32>
      tpu.vector_store %arg5[%c0_11, %c0_12], %19 {strides = array<i32>} : memref<8x128xf32, #tpu.memory_space<vmem>>, vector<8x128xf32>,
    } else {
    }
    %c0 = arith.constant 0 : index
    %c0_1 = arith.constant 0 : index
    %3 = vector.load %arg2[%c0, %c0_1] : memref<16x128xf32, #tpu.memory_space<vmem>>, vector<16x128xf32>
    %c0_2 = arith.constant 0 : index
    %c0_3 = arith.constant 0 : index
    %4 = vector.load %arg3[%c0_2, %c0_3] : memref<16x128xf32, #tpu.memory_space<vmem>>, vector<16x128xf32>
    %5 = arith.subf %4, %3 : vector<16x128xf32>
    %6 = math.absf %5 : vector<16x128xf32>
    %7 = math.absf %4 : vector<16x128xf32>
    %8 = math.absf %3 : vector<16x128xf32>
    %9 = arith.addf %7, %8 : vector<16x128xf32>
    %10 = arith.divf %6, %9 : vector<16x128xf32>
    %c0_4 = arith.constant 0 : index
    %c0_5 = arith.constant 0 : index
    %11 = vector.load %arg5[%c0_4, %c0_5] : memref<8x128xf32, #tpu.memory_space<vmem>>, vector<8x128xf32>
    %12 = vector.shape_cast %10 : vector<16x128xf32> to vector<2x8x128xf32>
    %cst = arith.constant dense<0.000000e+00> : vector<8x128xf32>
    %13 = vector.multi_reduction <add>, %12, %cst [0] : vector<2x8x128xf32> to vector<8x128xf32>
    %14 = arith.addf %11, %13 : vector<8x128xf32>
    %c0_6 = arith.constant 0 : index
    %c0_7 = arith.constant 0 : index
    %15 = vector.load %arg5[%c0_6, %c0_7] : memref<8x128xf32, #tpu.memory_space<vmem>>, vector<8x128xf32>
    tpu.vector_store %arg5[%c0_6, %c0_7], %14 {strides = array<i32>} : memref<8x128xf32, #tpu.memory_space<vmem>>, vector<8x128xf32>,
    %c0_i32_8 = arith.constant 0 : i32
    %16 = arith.cmpi eq, %arg1, %c0_i32_8 : i32
    %17 = arith.extui %16 : i1 to i32
    %c0_i32_9 = arith.constant 0 : i32
    %18 = arith.cmpi ne, %17, %c0_i32_9 : i32
    scf.if %18 {
      %c0_10 = arith.constant 0 : index
      %c0_11 = arith.constant 0 : index
      %19 = vector.load %arg5[%c0_10, %c0_11] : memref<8x128xf32, #tpu.memory_space<vmem>>, vector<8x128xf32>
      %c0_12 = arith.constant 0 : index
      %c0_13 = arith.constant 0 : index
      %20 = vector.load %arg4[%c0_12, %c0_13] : memref<8x128xf32, #tpu.memory_space<vmem>>, vector<8x128xf32>
      tpu.vector_store %arg4[%c0_12, %c0_13], %19 {strides = array<i32>} : memref<8x128xf32, #tpu.memory_space<vmem>>, vector<8x128xf32>,
    } else {
    }
    return
  }
  func.func @transform_0(%arg0: i32, %arg1: i32) -> (i32, i32) {
    %c1_i32 = arith.constant 1 : i32
    %0 = arith.muli %arg0, %c1_i32 : i32
    %1 = arith.addi %0, %arg1 : i32
    %c0_i32 = arith.constant 0 : i32
    %2 = arith.minsi %1, %c0_i32 : i32
    %c0_i32_0 = arith.constant 0 : i32
    %c0_i32_1 = arith.constant 0 : i32
    return %2, %c0_i32_0 : i32, i32
  }
  func.func @transform_1(%arg0: i32, %arg1: i32) -> (i32, i32) {
    %c1_i32 = arith.constant 1 : i32
    %0 = arith.muli %arg0, %c1_i32 : i32
    %1 = arith.addi %0, %arg1 : i32
    %c0_i32 = arith.constant 0 : i32
    %2 = arith.minsi %1, %c0_i32 : i32
    %c0_i32_0 = arith.constant 0 : i32
    %c0_i32_1 = arith.constant 0 : i32
    return %2, %c0_i32_0 : i32, i32
  }
  func.func @transform_2(%arg0: i32, %arg1: i32) -> (i32, i32) {
    %c0_i32 = arith.constant 0 : i32
    %c0_i32_0 = arith.constant 0 : i32
    return %arg0, %c0_i32 : i32, i32
  }
}

</mosaic_0001>

<llo_original>
// kernel: tpu_custom_call.1
$region0: #{tpu_custom_call.1}
  #allocation0 [shape = 'u32[]', space=smem, size = 0x4, offset = 0x4, fixed_abs, tag = 'smem constant byte address 0x4 - core index']
  #allocation1 [shape = 'u32[144,128]{1,0:T(1,128)}', space=vmem, size = 0x12000, scoped, tag = 'internal scratch']
  #allocation2 [shape = 'f32[8,128]{1,0:T(8,128)}', space=vmem, size = 0x1000, scoped, tag = 'scratch operand']
  %s0 = inlined_call_operand.hbm [shape: f32[16,128], index: 0, kind: input, shape index: {}]
  %s1 = inlined_call_operand.hbm [shape: f32[16,128], index: 1, kind: input, shape index: {}]
  %s2 = inlined_call_operand.hbm [shape: f32[8,128], index: 2, kind: output, shape index: {}]
  %s3 = sld [smem:[#allocation0]]
  $region34: #{tpu_custom_call.1} parent=0
    _
  %s5 = ssub.s32 1, %s3
  %s6 = scalar_select 0, %s5, %s3
  $region1: #{tpu_custom_call.1} parent=0
    #allocation3 [shape = 'u8[8192]{0}', space=vmem, size = 0x2000, scoped, tag = 'input window, operand 0, single buffered']
    #allocation4 [shape = 's32[1]{0}', space=sflag, size = 0x4, scoped, tag = 'scoped memory for tpu_custom_call.1']
    #allocation5 [shape = 's32[1]{0}', space=sflag, size = 0x4, scoped, tag = 'scoped memory for tpu_custom_call.1']
    #allocation6 [shape = 'u8[8192]{0}', space=vmem, size = 0x2000, scoped, tag = 'input window, operand 1, single buffered']
    #allocation7 [shape = 's32[1]{0}', space=sflag, size = 0x4, scoped, tag = 'scoped memory for tpu_custom_call.1']
    #allocation8 [shape = 'u8[4096]{0}', space=vmem, size = 0x1000, scoped, tag = 'output window, operand 0, single buffered']
    %7 = vsyncpa [#allocation4], 0
    %8 = vsyncpa [#allocation7], 0
    %9 = vsyncpa [#allocation5], 0
    // Predicated region
    $region2: #{tpu_custom_call.1} parent=1 // pred_check
      _
    $region3: #{tpu_custom_call.1} parent=1 // pred_check_branch
      %11 = sbr.rel (0) target = $region5
    $region4: #{tpu_custom_call.1} parent=1 // pred_region
      %s12 = sadd.s32 0, 0
      %p13 = scmp.lt.s32.totalorder %s12, 0
      %s14 = scalar_select %p13, %s12, 0
      %s15 = smul.u32 2, %s14
      %s17 = ssub.s32 256, 256
      %18 = vsyncadd [#allocation4], %s17
      %s19 = smul.addr %s15, 128
      %s20 = scalar_lea.hbm %s0, %s19
      %s21 = sshll.u32 [#allocation3], 4
      %s22 = int_to_ptr.vmem [resolvable:$true] %s21
      %27 = dma.hbm_to_vmem [thread:$0]  %s20, 256, %s22, [#allocation4], 128, 128, 8
    $region5: #{tpu_custom_call.1} parent=1 // pred_fallthru
      _
    // Predicated region
    $region6: #{tpu_custom_call.1} parent=1 // pred_check
      _
    $region7: #{tpu_custom_call.1} parent=1 // pred_check_branch
      %29 = sbr.rel (0) target = $region9
    $region8: #{tpu_custom_call.1} parent=1 // pred_region
      %s30 = sadd.s32 0, 0
      %p31 = scmp.lt.s32.totalorder %s30, 0
      %s32 = scalar_select %p31, %s30, 0
      %s33 = smul.u32 2, %s32
      %s35 = ssub.s32 256, 256
      %36 = vsyncadd [#allocation7], %s35
      %s37 = smul.addr %s33, 128
      %s38 = scalar_lea.hbm %s1, %s37
      %s39 = sshll.u32 [#allocation6], 4
      %s40 = int_to_ptr.vmem [resolvable:$true] %s39
      %45 = dma.hbm_to_vmem [thread:$0]  %s38, 256, %s40, [#allocation7], 128, 128, 8
    $region9: #{tpu_custom_call.1} parent=1 // pred_fallthru
      _
    // Predicated region
    $region10: #{tpu_custom_call.1} parent=1 // pred_check
      _
    $region11: #{tpu_custom_call.1} parent=1 // pred_check_branch
      %47 = sbr.rel (0) target = $region13
    $region12: #{tpu_custom_call.1} parent=1 // pred_region
      %48 = dma.done [#allocation4], 256
    $region13: #{tpu_custom_call.1} parent=1 // pred_fallthru
      _
    // Predicated region
    $region14: #{tpu_custom_call.1} parent=1 // pred_check
      _
    $region15: #{tpu_custom_call.1} parent=1 // pred_check_branch
      %50 = sbr.rel (0) target = $region17
    $region16: #{tpu_custom_call.1} parent=1 // pred_region
      %51 = dma.done [#allocation7], 256
    $region17: #{tpu_custom_call.1} parent=1 // pred_fallthru
      _
    %s52 = sadd.s32 0, 0
    %p53 = scmp.lt.s32.totalorder %s52, 0
    %s54 = scalar_select %p53, %s52, 0
    %s55 = smul.u32 2, %s54
    %s56 = sadd.s32 0, 0
    %p57 = scmp.lt.s32.totalorder %s56, 0
    %s58 = scalar_select %p57, %s56, 0
    %s59 = smul.u32 2, %s58
    %p60 = scmp.eq.s32.totalorder 0, 0
    // Predicated region
    $region18: #{tpu_custom_call.1} parent=1 // pred_check
      %p61 = pneg %p60
    $region19: #{tpu_custom_call.1} parent=1 // pred_check_branch
      %63 = sbr.rel (%p61) target = $region21
    $region20: #{tpu_custom_call.1} parent=1 // pred_region
      %64 = vst [vmem:[#allocation2] sm:$0xff] 0.0
    $region21: #{tpu_custom_call.1} parent=1 // pred_fallthru
      _
    %v65 = vld [vmem:[#allocation3] sm:$0xff]
    %v66 = vld [vmem:[#allocation3 + $0x8] sm:$0xff]
    %v67 = vld [vmem:[#allocation6] sm:$0xff]
    %v68 = vld [vmem:[#allocation6 + $0x8] sm:$0xff]
    %v69 = vsub.f32 %v67, %v65
    %v70 = vsub.f32 %v68, %v66
    %v71 = vand.u32 2147483647, %v69
    %v72 = vand.u32 2147483647, %v70
    %v73 = vand.u32 2147483647, %v67
    %v74 = vand.u32 2147483647, %v68
    %v75 = vand.u32 2147483647, %v65
    %v76 = vand.u32 2147483647, %v66
    %v77 = vadd.f32 %v73, %v75
    %v78 = vadd.f32 %v74, %v76
    %v79 = vrcp.pop %v77
    %v80 = vmul.f32 %v71, %v79
    %v81 = vrcp.pop %v78
    %v82 = vmul.f32 %v72, %v81
    %v83 = vld [vmem:[#allocation2] sm:$0xff]
    %v84 = vadd.f32 %v80, %v82
    %v85 = vadd.f32 %v83, %v84
    %86 = vst [vmem:[#allocation2] sm:$0xff] %v85
    // Predicated region
    $region22: #{tpu_custom_call.1} parent=1 // pred_check
      %p87 = pneg %p60
    $region23: #{tpu_custom_call.1} parent=1 // pred_check_branch
      %89 = sbr.rel (%p87) target = $region25
    $region24: #{tpu_custom_call.1} parent=1 // pred_region
      %v90 = vld [vmem:[#allocation2] sm:$0xff]
      %91 = vst [vmem:[#allocation8] sm:$0xff] %v90
    $region25: #{tpu_custom_call.1} parent=1 // pred_fallthru
      _
    // Predicated region
    $region26: #{tpu_custom_call.1} parent=1 // pred_check
      _
    $region27: #{tpu_custom_call.1} parent=1 // pred_check_branch
      %93 = sbr.rel (0) target = $region29
    $region28: #{tpu_custom_call.1} parent=1 // pred_region
      %s95 = ssub.s32 128, 128
      %96 = vsyncadd [#allocation5], %s95
      %s98 = sshll.u32 [#allocation8], 4
      %s99 = int_to_ptr.vmem [resolvable:$true] %s98
      %101 = dma.vmem_to_hbm [thread:$0]  %s99, 128, %s2, [#allocation5]
    $region29: #{tpu_custom_call.1} parent=1 // pred_fallthru
      _
    // Predicated region
    $region30: #{tpu_custom_call.1} parent=1 // pred_check
      _
    $region31: #{tpu_custom_call.1} parent=1 // pred_check_branch
      %103 = sbr.rel (0) target = $region33
    $region32: #{tpu_custom_call.1} parent=1 // pred_region
      %104 = dma.done [#allocation5], 128
    $region33: #{tpu_custom_call.1} parent=1 // pred_fallthru
      _
    %105 = vsyncpa [#allocation4], 1
    %106 = vsyncpa [#allocation7], 1
    %107 = vsyncpa [#allocation5], 1

</llo_original>
